<compile_context>
chip_gen: v5e
topology: v5e:2x2
jax: 0.10.0
libtpu: 0.0.40
codegen_flags: <defaults>
</compile_context>

<pallas_src>
import functools

import jax
import jax.numpy as jnp
from jax.experimental import pallas as pl
from jax.experimental.pallas import tpu as pltpu


def _accum_chunks(x_ref, acc_ref, *, n_full, rem, c):
    """Accumulate the current tile into acc_ref, 128 lanes at a time.

    Per chunk: load in the native dtype, fused upcast to f32, elementwise add
    (pure VPU) -- no whole-tile f32 temp, no cross-lane reduce.  `rem` > 0 adds
    one extra chunk whose lanes >= rem are masked to zero (ragged tail).
    """
    if n_full > 0:
        def body(q, carry):
            start = pl.multiple_of(q * 128, 128)
            acc_ref[...] += x_ref[:, pl.ds(start, 128)].astype(jnp.float32)
            return carry
        jax.lax.fori_loop(0, n_full, body, 0)
    if rem:
        start = n_full * 128                      # static
        lane = jax.lax.broadcasted_iota(jnp.int32, (c, 128), 1)
        chunk = x_ref[:, pl.ds(start, 128)].astype(jnp.float32)
        # Lanes >= rem were never DMA'd (Pallas does not zero-fill partial
        # blocks) -> select them away before accumulating.
        acc_ref[...] += jnp.where(lane < rem, chunk, 0.0)


def _dyrelu_coefs_kernel(x_ref, w1_ref, b1_ref, w2_ref, b2_ref, out_ref,
                         acc_ref, *, tile_hw, last_valid, inv_hw):
    """One (batch row, spatial tile) grid step.

    x_ref  : (C, tile_hw)      activation tile (native dtype, batch dim squeezed)
    w1_ref : (C, Ch)   f32     fc1 weight, native (in_features, out_features)
    b1_ref : (1, Ch)   f32
    w2_ref : (Ch, K2)  f32     fc2 weight, native (in_features, out_features)
    b2_ref : (1, K2)   f32
    out_ref: (1, K2)   f32     theta for this batch row (lane-dense)
    acc_ref: (C, 128)  f32     lane-dense running spatial sum (VMEM scratch)
    """
    j = pl.program_id(1)
    nj = pl.num_programs(1)
    c = acc_ref.shape[0]
    n_full = tile_hw // 128
    ragged = last_valid != tile_hw            # static

    @pl.when(j == 0)
    def _init():
        acc_ref[...] = jnp.zeros_like(acc_ref)

    if not ragged:
        _accum_chunks(x_ref, acc_ref, n_full=n_full, rem=0, c=c)
    else:
        @pl.when(j < nj - 1)
        def _full_tiles():
            _accum_chunks(x_ref, acc_ref, n_full=n_full, rem=0, c=c)

        @pl.when(j == nj - 1)
        def _tail_tile():
            _accum_chunks(x_ref, acc_ref, n_full=last_valid // 128,
                          rem=last_valid % 128, c=c)

    # Tiny fc1 / relu / fc2 / 2*sigmoid(t)-1 epilogue: once per batch row, in
    # row-vector form.  The cross-lane reduction of the accumulator is folded
    # into the first matmul so theta lands along lanes and the output store is
    # lane-dense (no column vectors, no masked vst on the output).
    @pl.when(j == nj - 1)
    def _finalize():
        hp = jnp.dot(acc_ref[...].T, w1_ref[...],
                     preferred_element_type=jnp.float32)               # (128, Ch)
        h = jnp.sum(hp, axis=0, keepdims=True) * inv_hw + b1_ref[...]  # (1, Ch)
        h = jnp.maximum(h, 0.0)
        t = jnp.dot(h, w2_ref[...],
                    preferred_element_type=jnp.float32) + b2_ref[...]  # (1, K2)
        out_ref[...] = (2.0 * jax.nn.sigmoid(t) - 1.0).astype(out_ref.dtype)


def _choose_tile_hw(hw, c, itemsize, target_bytes=8 * 1024 * 1024):
    """Largest 128-multiple lane tile with a ~target_bytes (C, tile_hw) block."""
    hw_up = ((hw + 127) // 128) * 128
    lanes_budget = max(128, (target_bytes // max(1, c * itemsize)) // 128 * 128)
    return min(hw_up, lanes_budget)


@functools.partial(jax.jit, static_argnames=("conv_type", "tile_hw"))
def dyrelu_get_relu_coefs(x, w1, b1, w2, b2, conv_type="2d", tile_hw=None):
    """DyReLU.get_relu_coefs.

    x : NCHW if conv_type == '2d', NCL if conv_type == '1d' (any float dtype).
    w1: (C, Ch), b1: (1, Ch), w2: (Ch, K2), b2: (1, K2)   -- (in, out) layout.
    Returns theta of shape (N, K2) in float32, matching
        theta = 2 * sigmoid(fc2(relu(fc1(mean_spatial(x))))) - 1.
    """
    assert conv_type in ("1d", "2d")
    if conv_type == "2d":
        n, c, h, w = x.shape
        hw = h * w
        x_flat = x.reshape(n, c, hw)
    else:
        n, c, hw = x.shape
        x_flat = x

    hidden = w1.shape[1]
    two_k = w2.shape[1]

    if tile_hw is None:
        tile_hw = _choose_tile_hw(hw, c, x.dtype.itemsize)
    tile_hw = max(128, (int(tile_hw) // 128) * 128)      # lane dim 128-aligned
    hw_up = ((hw + 127) // 128) * 128
    tile_hw = min(tile_hw, hw_up)

    num_hw_blocks = pl.cdiv(hw, tile_hw)
    last_valid = hw - (num_hw_blocks - 1) * tile_hw      # 1 .. tile_hw

    # Weights stay in their native (in_features, out_features) layout (tiny).
    w1_f = w1.astype(jnp.float32)                        # (C, Ch)
    w2_f = w2.astype(jnp.float32)                        # (Ch, K2)
    b1_r = b1.reshape(1, hidden).astype(jnp.float32)     # (1, Ch)
    b2_r = b2.reshape(1, two_k).astype(jnp.float32)      # (1, K2)

    kernel = functools.partial(_dyrelu_coefs_kernel, tile_hw=tile_hw,
                               last_valid=last_valid, inv_hw=1.0 / float(hw))

    cost = pl.CostEstimate(
        flops=n * c * hw + 2 * n * (128 * c * hidden + hidden * two_k),
        transcendentals=n * two_k,
        bytes_accessed=x_flat.size * x_flat.dtype.itemsize
        + 4 * (w1.size + b1.size + w2.size + b2.size + n * two_k),
    )

    out = pl.pallas_call(
        kernel,
        out_shape=jax.ShapeDtypeStruct((n, 1, two_k), jnp.float32),
        grid=(n, num_hw_blocks),
        in_specs=[
            pl.BlockSpec((None, c, tile_hw), lambda i, j: (i, 0, j)),  # x tile
            pl.BlockSpec((c, hidden), lambda i, j: (0, 0)),            # fc1 w
            pl.BlockSpec((1, hidden), lambda i, j: (0, 0)),            # fc1 b
            pl.BlockSpec((hidden, two_k), lambda i, j: (0, 0)),        # fc2 w
            pl.BlockSpec((1, two_k), lambda i, j: (0, 0)),             # fc2 b
        ],
        out_specs=pl.BlockSpec((None, 1, two_k), lambda i, j: (i, 0, 0)),
        scratch_shapes=[pltpu.VMEM((c, 128), jnp.float32)],
        compiler_params=pltpu.CompilerParams(
            dimension_semantics=("parallel", "arbitrary"),
            vmem_limit_bytes=32 * 1024 * 1024,
        ),
        cost_estimate=cost,
    )(x_flat, w1_f, b1_r, w2_f, b2_r)

    return out.reshape(n, two_k)


def init_dyrelu_params(key, channels, reduction=4, k=2, out_features=None):
    """Init mimicking nn.Linear defaults (uniform +/- 1/sqrt(fan_in)).

    Weights are stored transposed vs PyTorch, i.e. (in_features, out_features).
    out_features defaults to 2*k (DyReLU); pass 2*k*channels for DyReLUB.
    """
    hidden = channels // reduction
    if out_features is None:
        out_features = 2 * k
    k1, k2, k3, k4 = jax.random.split(key, 4)
    bound1 = 1.0 / jnp.sqrt(float(channels))
    bound2 = 1.0 / jnp.sqrt(float(hidden))
    w1 = jax.random.uniform(k1, (channels, hidden), jnp.float32, -bound1, bound1)
    b1 = jax.random.uniform(k2, (1, hidden), jnp.float32, -bound1, bound1)
    w2 = jax.random.uniform(k3, (hidden, out_features), jnp.float32, -bound2, bound2)
    b2 = jax.random.uniform(k4, (1, out_features), jnp.float32, -bound2, bound2)
    # Buffers from the reference module (unused by get_relu_coefs).
    lambdas = jnp.array([1.0] * k + [0.5] * k, jnp.float32)
    init_v = jnp.array([1.0] + [0.0] * (2 * k - 1), jnp.float32)
    return (w1, b1, w2, b2), (lambdas, init_v)


def _reference(x, w1, b1, w2, b2, conv_type="2d"):
    theta = jnp.mean(x.astype(jnp.float32), axis=-1)
    if conv_type == "2d":
        theta = jnp.mean(theta, axis=-1)
    h = jnp.maximum(theta @ w1 + b1, 0.0)
    t = h @ w2 + b2
    return 2.0 * jax.nn.sigmoid(t) - 1.0


if __name__ == "__main__":
    # Small shapes consistent with the module: NCHW, channels divisible by reduction.
    N, C, H, W = 2, 16, 16, 16
    reduction, k = 4, 2

    key = jax.random.PRNGKey(0)
    kx, kp, kb = jax.random.split(key, 3)
    x = jax.random.normal(kx, (N, C, H, W), jnp.float32)
    (w1, b1, w2, b2), _buffers = init_dyrelu_params(kp, C, reduction, k)

    # 1) f32, forced 128-lane tile -> 2 spatial grid steps (exercises the
    #    per-chunk accumulate + pl.when finalize path).
    theta = dyrelu_get_relu_coefs(x, w1, b1, w2, b2, conv_type="2d", tile_hw=128)
    theta = jax.block_until_ready(theta)
    ref = _reference(x, w1, b1, w2, b2)
    assert theta.shape == (N, 2 * k)
    assert jnp.allclose(theta, ref, atol=1e-4, rtol=1e-4), \
        float(jnp.max(jnp.abs(theta - ref)))

    # 2) Ragged spatial extent (H*W not a multiple of the tile) -> in-kernel
    #    masked tail, no wrapper-side padding copy.
    x_rag = x[:, :, :, :13]                 # H*W = 208, tile 128 -> tail of 80
    theta_r = dyrelu_get_relu_coefs(x_rag, w1, b1, w2, b2, conv_type="2d",
                                    tile_hw=128)
    theta_r = jax.block_until_ready(theta_r)
    ref_r = _reference(x_rag, w1, b1, w2, b2)
    assert jnp.allclose(theta_r, ref_r, atol=1e-4, rtol=1e-4), \
        float(jnp.max(jnp.abs(theta_r - ref_r)))

    # 3) bf16 activations through the DMA (auto tile), f32 accumulation inside.
    x_bf16 = x.astype(jnp.bfloat16)
    theta_bf = dyrelu_get_relu_coefs(x_bf16, w1, b1, w2, b2, conv_type="2d")
    theta_bf = jax.block_until_ready(theta_bf)
    ref_bf = _reference(x_bf16, w1, b1, w2, b2)
    assert jnp.allclose(theta_bf, ref_bf, atol=1e-3, rtol=1e-3), \
        float(jnp.max(jnp.abs(theta_bf - ref_bf)))

    # 4) DyReLUB-style wide fc2 (2*k*channels outputs) through the same kernel.
    (w1b, b1b, w2b, b2b), _ = init_dyrelu_params(kb, C, reduction, k,
                                                 out_features=2 * k * C)
    theta_b = dyrelu_get_relu_coefs(x, w1b, b1b, w2b, b2b,
                                    conv_type="2d", tile_hw=128)
    theta_b = jax.block_until_ready(theta_b)
    ref_b = _reference(x, w1b, b1b, w2b, b2b)
    assert theta_b.shape == (N, 2 * k * C)
    assert jnp.allclose(theta_b, ref_b, atol=1e-4, rtol=1e-4), \
        float(jnp.max(jnp.abs(theta_b - ref_b)))

    print("KERNEL_OK")
</pallas_src>

<mosaic_0001>
module attributes {stable_mosaic.version = 11 : i64} {
  func.func @_dyrelu_coefs_kernel(%arg0: i32, %arg1: i32, %arg2: memref<1x16x128xf32, #tpu.memory_space<vmem>>, %arg3: memref<16x4xf32, #tpu.memory_space<vmem>>, %arg4: memref<1x4xf32, #tpu.memory_space<vmem>>, %arg5: memref<4x4xf32, #tpu.memory_space<vmem>>, %arg6: memref<1x4xf32, #tpu.memory_space<vmem>>, %arg7: memref<1x1x4xf32, #tpu.memory_space<vmem>>, %arg8: memref<16x128xf32, #tpu.memory_space<vmem>>) attributes {dimension_semantics = [#tpu.dimension_semantics<parallel>, #tpu.dimension_semantics<arbitrary>], iteration_bounds = array<i64: 2, 2>, scalar_prefetch = 0 : i64, scratch_operands = 1 : i64, tpu.core_type = #tpu.core_type<tc>, window_params = [{transform_indices = @transform_0, window_bounds = array<i64: 1, 16, 128>}, {pipeline_mode = #tpu.pipeline_mode<synchronous>, transform_indices = @transform_1, window_bounds = array<i64: 16, 4>}, {pipeline_mode = #tpu.pipeline_mode<synchronous>, transform_indices = @transform_2, window_bounds = array<i64: 1, 4>}, {pipeline_mode = #tpu.pipeline_mode<synchronous>, transform_indices = @transform_3, window_bounds = array<i64: 4, 4>}, {pipeline_mode = #tpu.pipeline_mode<synchronous>, transform_indices = @transform_4, window_bounds = array<i64: 1, 4>}, {transform_indices = @transform_5, window_bounds = array<i64: 1, 1, 4>}]} {
    %c0_i32 = arith.constant 0 : i32
    %0 = arith.cmpi eq, %arg1, %c0_i32 : i32
    %1 = arith.extui %0 : i1 to i32
    %c0_i32_0 = arith.constant 0 : i32
    %2 = arith.cmpi ne, %1, %c0_i32_0 : i32
    scf.if %2 {
      %cst = arith.constant 0.000000e+00 : f32
      %14 = vector.broadcast %cst : f32 to vector<16x128xf32>
      %c0_9 = arith.constant 0 : index
      %c0_10 = arith.constant 0 : index
      %15 = vector.load %arg8[%c0_9, %c0_10] : memref<16x128xf32, #tpu.memory_space<vmem>>, vector<16x128xf32>
      tpu.vector_store %arg8[%c0_9, %c0_10], %14 {strides = array<i32>} : memref<16x128xf32, #tpu.memory_space<vmem>>, vector<16x128xf32>,
    } else {
    }
    %c0_i32_1 = arith.constant 0 : i32
    %c128_i32 = arith.constant 128 : i32
    %3 = arith.muli %c0_i32_1, %c128_i32 : i32
    %4 = tpu.assume_multiple %3, 128 : i32
    %c0 = arith.constant 0 : index
    %c0_2 = arith.constant 0 : index
    %5 = vector.load %arg8[%c0, %c0_2] : memref<16x128xf32, #tpu.memory_space<vmem>>, vector<16x128xf32>
    %c0_3 = arith.constant 0 : index
    %c0_4 = arith.constant 0 : index
    %6 = arith.index_cast %4 : i32 to index
    %7 = vector.load %arg2[%c0_3, %c0_4, %6] : memref<1x16x128xf32, #tpu.memory_space<vmem>>, vector<1x16x128xf32>
    %8 = vector.shape_cast %7 : vector<1x16x128xf32> to vector<16x128xf32>
    %9 = arith.addf %5, %8 : vector<16x128xf32>
    %c0_5 = arith.constant 0 : index
    %c0_6 = arith.constant 0 : index
    %10 = vector.load %arg8[%c0_5, %c0_6] : memref<16x128xf32, #tpu.memory_space<vmem>>, vector<16x128xf32>
    tpu.vector_store %arg8[%c0_5, %c0_6], %9 {strides = array<i32>} : memref<16x128xf32, #tpu.memory_space<vmem>>, vector<16x128xf32>,
    %c1_i32 = arith.constant 1 : i32
    %c1_i32_7 = arith.constant 1 : i32
    %11 = arith.cmpi eq, %arg1, %c1_i32_7 : i32
    %12 = arith.extui %11 : i1 to i32
    %c0_i32_8 = arith.constant 0 : i32
    %13 = arith.cmpi ne, %12, %c0_i32_8 : i32
    scf.if %13 {
      %c0_9 = arith.constant 0 : index
      %c0_10 = arith.constant 0 : index
      %14 = vector.load %arg8[%c0_9, %c0_10] : memref<16x128xf32, #tpu.memory_space<vmem>>, vector<16x128xf32>
      %15 = tpu.transpose %14, [1, 0] : vector<16x128xf32> -> vector<128x16xf32>
      %c0_11 = arith.constant 0 : index
      %c0_12 = arith.constant 0 : index
      %16 = vector.load %arg3[%c0_11, %c0_12] : memref<16x4xf32, #tpu.memory_space<vmem>>, vector<16x4xf32>
      %cst = arith.constant dense<0.000000e+00> : vector<128x4xf32>
      %17 = tpu.matmul %15, %16, %cst {dimension_numbers = #tpu.dot_dimension_numbers<[1], [0], [0], [1], [0, 0, 1, 1], [], []>} : vector<128x16xf32>, vector<16x4xf32>, vector<128x4xf32> -> vector<128x4xf32>
      %cst_13 = arith.constant dense<0.000000e+00> : vector<4xf32>
      %18 = vector.multi_reduction <add>, %17, %cst_13 [0] : vector<128x4xf32> to vector<4xf32>
      %19 = vector.shape_cast %18 : vector<4xf32> to vector<1x4xf32>
      %cst_14 = arith.constant 3.906250e-03 : f32
      %20 = vector.broadcast %cst_14 : f32 to vector<1x4xf32>
      %21 = arith.mulf %19, %20 : vector<1x4xf32>
      %c0_15 = arith.constant 0 : index
      %c0_16 = arith.constant 0 : index
      %22 = vector.load %arg4[%c0_15, %c0_16] : memref<1x4xf32, #tpu.memory_space<vmem>>, vector<1x4xf32>
      %23 = arith.addf %21, %22 : vector<1x4xf32>
      %cst_17 = arith.constant 0.000000e+00 : f32
      %24 = vector.broadcast %cst_17 : f32 to vector<1x4xf32>
      %25 = arith.maximumf %23, %24 : vector<1x4xf32>
      %c0_18 = arith.constant 0 : index
      %c0_19 = arith.constant 0 : index
      %26 = vector.load %arg5[%c0_18, %c0_19] : memref<4x4xf32, #tpu.memory_space<vmem>>, vector<4x4xf32>
      %cst_20 = arith.constant dense<0.000000e+00> : vector<1x4xf32>
      %27 = tpu.matmul %25, %26, %cst_20 {dimension_numbers = #tpu.dot_dimension_numbers<[1], [0], [0], [1], [0, 0, 1, 1], [], []>} : vector<1x4xf32>, vector<4x4xf32>, vector<1x4xf32> -> vector<1x4xf32>
      %c0_21 = arith.constant 0 : index
      %c0_22 = arith.constant 0 : index
      %28 = vector.load %arg6[%c0_21, %c0_22] : memref<1x4xf32, #tpu.memory_space<vmem>>, vector<1x4xf32>
      %29 = arith.addf %27, %28 : vector<1x4xf32>
      %30 = arith.negf %29 : vector<1x4xf32>
      %31 = math.exp %30 : vector<1x4xf32>
      %cst_23 = arith.constant 1.000000e+00 : f32
      %32 = vector.broadcast %cst_23 : f32 to vector<1x4xf32>
      %33 = arith.addf %32, %31 : vector<1x4xf32>
      %34 = arith.divf %32, %33 : vector<1x4xf32>
      %cst_24 = arith.constant 2.000000e+00 : f32
      %35 = vector.broadcast %cst_24 : f32 to vector<1x4xf32>
      %36 = arith.mulf %35, %34 : vector<1x4xf32>
      %cst_25 = arith.constant 1.000000e+00 : f32
      %37 = vector.broadcast %cst_25 : f32 to vector<1x4xf32>
      %38 = arith.subf %36, %37 : vector<1x4xf32>
      %c0_26 = arith.constant 0 : index
      %c0_27 = arith.constant 0 : index
      %c0_28 = arith.constant 0 : index
      %39 = vector.load %arg7[%c0_26, %c0_27, %c0_28] : memref<1x1x4xf32, #tpu.memory_space<vmem>>, vector<1x1x4xf32>
      %40 = vector.shape_cast %39 : vector<1x1x4xf32> to vector<1x4xf32>
      %41 = vector.shape_cast %38 : vector<1x4xf32> to vector<1x1x4xf32>
      tpu.vector_store %arg7[%c0_26, %c0_27, %c0_28], %41 {strides = array<i32>} : memref<1x1x4xf32, #tpu.memory_space<vmem>>, vector<1x1x4xf32>,
    } else {
    }
    return
  }
  func.func @transform_0(%arg0: i32, %arg1: i32) -> (i32, i32, i32) {
    %c0_i32 = arith.constant 0 : i32
    %c0_i32_0 = arith.constant 0 : i32
    return %arg0, %c0_i32, %arg1 : i32, i32, i32
  }
  func.func @transform_1(%arg0: i32, %arg1: i32) -> (i32, i32) {
    %c0_i32 = arith.constant 0 : i32
    %c0_i32_0 = arith.constant 0 : i32
    %c0_i32_1 = arith.constant 0 : i32
    return %c0_i32, %c0_i32_0 : i32, i32
  }
  func.func @transform_2(%arg0: i32, %arg1: i32) -> (i32, i32) {
    %c0_i32 = arith.constant 0 : i32
    %c0_i32_0 = arith.constant 0 : i32
    %c0_i32_1 = arith.constant 0 : i32
    return %c0_i32, %c0_i32_0 : i32, i32
  }
  func.func @transform_3(%arg0: i32, %arg1: i32) -> (i32, i32) {
    %c0_i32 = arith.constant 0 : i32
    %c0_i32_0 = arith.constant 0 : i32
    %c0_i32_1 = arith.constant 0 : i32
    return %c0_i32, %c0_i32_0 : i32, i32
  }
  func.func @transform_4(%arg0: i32, %arg1: i32) -> (i32, i32) {
    %c0_i32 = arith.constant 0 : i32
    %c0_i32_0 = arith.constant 0 : i32
    %c0_i32_1 = arith.constant 0 : i32
    return %c0_i32, %c0_i32_0 : i32, i32
  }
  func.func @transform_5(%arg0: i32, %arg1: i32) -> (i32, i32, i32) {
    %c0_i32 = arith.constant 0 : i32
    %c0_i32_0 = arith.constant 0 : i32
    %c0_i32_1 = arith.constant 0 : i32
    return %arg0, %c0_i32, %c0_i32_0 : i32, i32, i32
  }
}

</mosaic_0001>

<llo_original>
// kernel: dyrelu_get_relu_coefs.1
$region0: #{dyrelu_get_relu_coefs.1}
  #allocation0 [shape = 'u32[]', space=smem, size = 0x4, offset = 0x4, fixed_abs, tag = 'smem constant byte address 0x4 - core index']
  #allocation1 [shape = 'u32[72,128]{1,0:T(1,128)}', space=vmem, size = 0x9000, scoped, tag = 'internal scratch']
  #allocation2 [shape = 'f32[16,128]{1,0:T(8,128)}', space=vmem, size = 0x2000, scoped, tag = 'scratch operand']
  %s0 = inlined_call_operand.vmem [shape: f32[2,16,256], index: 0, kind: input, shape index: {}]
  %s1 = inlined_call_operand.vmem [shape: f32[16,4], index: 1, kind: input, shape index: {}]
  %s2 = inlined_call_operand.vmem [shape: f32[1,4], index: 2, kind: input, shape index: {}]
  %s3 = inlined_call_operand.vmem [shape: f32[4,4], index: 3, kind: input, shape index: {}]
  %s4 = inlined_call_operand.vmem [shape: f32[1,4], index: 4, kind: input, shape index: {}]
  %s5 = inlined_call_operand.hbm [shape: f32[2,1,4], index: 5, kind: output, shape index: {}]
  %s6 = sld [smem:[#allocation0]]
  $region99: #{dyrelu_get_relu_coefs.1} parent=0
    _
  %s8 = ssub.s32 1, %s6
  %s9 = scalar_select 0, %s8, %s6
  $region1: #{dyrelu_get_relu_coefs.1} parent=0
    #allocation3 [shape = 'u8[16384]{0}', space=vmem, size = 0x4000, scoped, tag = 'input window, operand 0']
    #allocation4 [shape = 'u8[1024]{0}', space=vmem, size = 0x400, scoped, tag = 'output window, operand 0']
    #allocation5 [shape = 's32[2]{0}', space=sflag, size = 0x8, scoped, tag = 'scoped memory for dyrelu_get_relu_coefs.1']
    %10 = vsyncpa [#allocation5], 0
    %s11 = scalar_lea.sflag [#allocation5], 1
    %12 = vsyncpa %s11, 0
    loop: start=0, step=1, limit=6
    $region2: #{dyrelu_get_relu_coefs.1} parent=1 // loop_pre_header
      _
    $region3: #{dyrelu_get_relu_coefs.1} parent=1 // loop_header
      %s14 = sphi 0, %s18
      %p15 = scmp.ge.s32.totalorder %s14, 6
      %s21 = sphi 0, %s33
      %s22 = sphi 0, %s29
      %s23 = sphi 0, %s21
      %s24 = sphi 0, %s22
      %s25 = sphi 0, %s23
      %s26 = sphi 0, %s24
      %s38 = sphi 0, %s40
      %s41 = sphi 0, %s38
      %s42 = sphi 0, %s41
      %s58 = sphi 0, %s42
      %s62 = sphi 0, %s62
      %s64 = sphi 0, %s62
      %s65 = sphi 0, %s64
      %s79 = sphi 0, %s65
      %s83 = sphi 0, %s83
      %s85 = sphi 0, %s83
      %s86 = sphi 0, %s85
      %s100 = sphi 0, %s86
      %s104 = sphi 0, %s104
      %s106 = sphi 0, %s104
      %s107 = sphi 0, %s106
      %s121 = sphi 0, %s107
      %s125 = sphi 0, %s125
      %s127 = sphi 0, %s125
      %s128 = sphi 0, %s127
      %s142 = sphi 0, %s128
      %s148 = sphi 0, %s150
      %s151 = sphi 0, %s148
      %s152 = sphi 0, %s151
      %s168 = sphi 0, %s152
    $region4: #{dyrelu_get_relu_coefs.1} parent=1 // loop_header_branch
      %17 = sbr.rel (%p15) target = $region8
    $region5: #{dyrelu_get_relu_coefs.1} parent=1 // loop_body
      %s19 = ssub.s32 %s14, 1
      %s20 = ssub.s32 %s14, 2
      %s27 = sadd.s32 1, %s22
      %p28 = scmp.ge.s32.totalorder %s27, 2
      %s29 = scalar_select %p28, 0, %s27
      %s30 = sadd.s32 1, %s21
      %s31 = scalar_select %p28, %s30, %s21
      %p32 = scmp.ge.s32.totalorder %s31, 2
      %s33 = scalar_select %p32, 0, %s31
      %s34 = ssub.s32 %s21, %s33
      %s35 = ssub.s32 %s22, %s29
      %s36 = sor.u32 %s34, %s35
      %p37 = scmp.eq.s32.totalorder %s36, 0
      %s39 = sadd.s32 %s38, 1
      %s40 = scalar_select %p37, %s38, %s39
      %p43 = pneg %p37
      %p44 = scmp.eq.s32.totalorder %s14, 3
      %p45 = por %p43, %p44
      %p46 = scmp.ne.s32.totalorder %s38, %s41
      %p47 = scmp.eq.s32.totalorder %s14, 0
      %p48 = por %p46, %p47
      %p49 = scmp.ne.s32.totalorder %s38, %s41
      %p50 = scmp.eq.s32.totalorder %s19, 3
      %p51 = por %p49, %p50
      %p52 = scmp.ne.s32.totalorder %s41, %s42
      %p53 = scmp.eq.s32.totalorder %s19, 0
      %p54 = por %p52, %p53
      %p55 = scmp.ne.s32.totalorder %s41, %s42
      %p56 = scmp.eq.s32.totalorder %s20, 3
      %p57 = por %p55, %p56
      %p59 = scmp.ne.s32.totalorder %s42, %s58
      %p60 = scmp.eq.s32.totalorder %s20, 0
      %p61 = por %p59, %p60
      %s63 = sadd.s32 %s62, 1
      %p66 = scmp.eq.s32.totalorder %s14, 3
      %p67 = scmp.ne.s32.totalorder %s62, %s64
      %p68 = scmp.eq.s32.totalorder %s14, 0
      %p69 = por %p67, %p68
      %p70 = scmp.ne.s32.totalorder %s62, %s64
      %p71 = scmp.eq.s32.totalorder %s19, 3
      %p72 = por %p70, %p71
      %p73 = scmp.ne.s32.totalorder %s64, %s65
      %p74 = scmp.eq.s32.totalorder %s19, 0
      %p75 = por %p73, %p74
      %p76 = scmp.ne.s32.totalorder %s64, %s65
      %p77 = scmp.eq.s32.totalorder %s20, 3
      %p78 = por %p76, %p77
      %p80 = scmp.ne.s32.totalorder %s65, %s79
      %p81 = scmp.eq.s32.totalorder %s20, 0
      %p82 = por %p80, %p81
      %s84 = sadd.s32 %s83, 1
      %p87 = scmp.eq.s32.totalorder %s14, 3
      %p88 = scmp.ne.s32.totalorder %s83, %s85
      %p89 = scmp.eq.s32.totalorder %s14, 0
      %p90 = por %p88, %p89
      %p91 = scmp.ne.s32.totalorder %s83, %s85
      %p92 = scmp.eq.s32.totalorder %s19, 3
      %p93 = por %p91, %p92
      %p94 = scmp.ne.s32.totalorder %s85, %s86
      %p95 = scmp.eq.s32.totalorder %s19, 0
      %p96 = por %p94, %p95
      %p97 = scmp.ne.s32.totalorder %s85, %s86
      %p98 = scmp.eq.s32.totalorder %s20, 3
      %p99 = por %p97, %p98
      %p101 = scmp.ne.s32.totalorder %s86, %s100
      %p102 = scmp.eq.s32.totalorder %s20, 0
      %p103 = por %p101, %p102
      %s105 = sadd.s32 %s104, 1
      %p108 = scmp.eq.s32.totalorder %s14, 3
      %p109 = scmp.ne.s32.totalorder %s104, %s106
      %p110 = scmp.eq.s32.totalorder %s14, 0
      %p111 = por %p109, %p110
      %p112 = scmp.ne.s32.totalorder %s104, %s106
      %p113 = scmp.eq.s32.totalorder %s19, 3
      %p114 = por %p112, %p113
      %p115 = scmp.ne.s32.totalorder %s106, %s107
      %p116 = scmp.eq.s32.totalorder %s19, 0
      %p117 = por %p115, %p116
      %p118 = scmp.ne.s32.totalorder %s106, %s107
      %p119 = scmp.eq.s32.totalorder %s20, 3
      %p120 = por %p118, %p119
      %p122 = scmp.ne.s32.totalorder %s107, %s121
      %p123 = scmp.eq.s32.totalorder %s20, 0
      %p124 = por %p122, %p123
      %s126 = sadd.s32 %s125, 1
      %p129 = scmp.eq.s32.totalorder %s14, 3
      %p130 = scmp.ne.s32.totalorder %s125, %s127
      %p131 = scmp.eq.s32.totalorder %s14, 0
      %p132 = por %p130, %p131
      %p133 = scmp.ne.s32.totalorder %s125, %s127
      %p134 = scmp.eq.s32.totalorder %s19, 3
      %p135 = por %p133, %p134
      %p136 = scmp.ne.s32.totalorder %s127, %s128
      %p137 = scmp.eq.s32.totalorder %s19, 0
      %p138 = por %p136, %p137
      %p139 = scmp.ne.s32.totalorder %s127, %s128
      %p140 = scmp.eq.s32.totalorder %s20, 3
      %p141 = por %p139, %p140
      %p143 = scmp.ne.s32.totalorder %s128, %s142
      %p144 = scmp.eq.s32.totalorder %s20, 0
      %p145 = por %p143, %p144
      %s146 = ssub.s32 %s21, %s33
      %p147 = scmp.eq.s32.totalorder %s146, 0
      %s149 = sadd.s32 %s148, 1
      %s150 = scalar_select %p147, %s148, %s149
      %p153 = pneg %p147
      %p154 = scmp.eq.s32.totalorder %s14, 3
      %p155 = por %p153, %p154
      %p156 = scmp.ne.s32.totalorder %s148, %s151
      %p157 = scmp.eq.s32.totalorder %s14, 0
      %p158 = por %p156, %p157
      %p159 = scmp.ne.s32.totalorder %s148, %s151
      %p160 = scmp.eq.s32.totalorder %s19, 3
      %p161 = por %p159, %p160
      %p162 = scmp.ne.s32.totalorder %s151, %s152
      %p163 = scmp.eq.s32.totalorder %s19, 0
      %p164 = por %p162, %p163
      %p165 = scmp.ne.s32.totalorder %s151, %s152
      %p166 = scmp.eq.s32.totalorder %s20, 3
      %p167 = por %p165, %p166
      %p169 = scmp.ne.s32.totalorder %s152, %s168
      %p170 = scmp.eq.s32.totalorder %s20, 0
      %p171 = por %p169, %p170
      %p172 = scmp.le.s32.totalorder 1, %s14
      %p173 = scmp.lt.s32.totalorder %s14, 5
      %p174 = pnand %p172, %p173
      %p175 = pneg %p174
      // Predicated region
      $region9: #{dyrelu_get_relu_coefs.1} parent=5 // pred_check
        _
      $region10: #{dyrelu_get_relu_coefs.1} parent=5 // pred_check_branch
        %177 = sbr.rel (%p174) target = $region12
      $region11: #{dyrelu_get_relu_coefs.1} parent=5 // pred_region
        %s178 = ssub.s32 %s14, 1
        // Predicated region
        $region13: #{dyrelu_get_relu_coefs.1} parent=11 // pred_check
          %p179 = pneg %p75
        $region14: #{dyrelu_get_relu_coefs.1} parent=11 // pred_check_branch
          %181 = sbr.rel (%p179) target = $region16
        $region15: #{dyrelu_get_relu_coefs.1} parent=11 // pred_region
          _
        $region16: #{dyrelu_get_relu_coefs.1} parent=11 // pred_fallthru
          _
        // Predicated region
        $region17: #{dyrelu_get_relu_coefs.1} parent=11 // pred_check
          %p182 = pneg %p96
        $region18: #{dyrelu_get_relu_coefs.1} parent=11 // pred_check_branch
          %184 = sbr.rel (%p182) target = $region20
        $region19: #{dyrelu_get_relu_coefs.1} parent=11 // pred_region
          _
        $region20: #{dyrelu_get_relu_coefs.1} parent=11 // pred_fallthru
          _
        // Predicated region
        $region21: #{dyrelu_get_relu_coefs.1} parent=11 // pred_check
          %p185 = pneg %p117
        $region22: #{dyrelu_get_relu_coefs.1} parent=11 // pred_check_branch
          %187 = sbr.rel (%p185) target = $region24
        $region23: #{dyrelu_get_relu_coefs.1} parent=11 // pred_region
          _
        $region24: #{dyrelu_get_relu_coefs.1} parent=11 // pred_fallthru
          _
        // Predicated region
        $region25: #{dyrelu_get_relu_coefs.1} parent=11 // pred_check
          %p188 = pneg %p138
        $region26: #{dyrelu_get_relu_coefs.1} parent=11 // pred_check_branch
          %190 = sbr.rel (%p188) target = $region28
        $region27: #{dyrelu_get_relu_coefs.1} parent=11 // pred_region
          _
        $region28: #{dyrelu_get_relu_coefs.1} parent=11 // pred_fallthru
          _
      $region12: #{dyrelu_get_relu_coefs.1} parent=5 // pred_fallthru
        _
      %p191 = scmp.lt.s32.totalorder %s14, 4
      // Predicated region
      $region29: #{dyrelu_get_relu_coefs.1} parent=5 // pred_check
        %p192 = pneg %p191
      $region30: #{dyrelu_get_relu_coefs.1} parent=5 // pred_check_branch
        %194 = sbr.rel (%p192) target = $region32
      $region31: #{dyrelu_get_relu_coefs.1} parent=5 // pred_region
        // Predicated region
        $region33: #{dyrelu_get_relu_coefs.1} parent=31 // pred_check
          %p195 = pneg %p48
        $region34: #{dyrelu_get_relu_coefs.1} parent=31 // pred_check_branch
          %197 = sbr.rel (%p195) target = $region36
        $region35: #{dyrelu_get_relu_coefs.1} parent=31 // pred_region
          %s198 = sand.u32 %s38, 1
          %s199 = sand.u32 %s38, 1
          %s200 = smul.addr %s199, 16
          %s201 = scalar_lea.vmem [#allocation3], %s200
          %s202 = smul.addr %s21, 4
          %s203 = sadd.s32 %s22, %s202
          %s204 = smul.addr %s203, 8
          %s205 = scalar_lea.vmem %s0, %s204
          // Predicated region
          $region37: #{dyrelu_get_relu_coefs.1} parent=35 // pred_check
            _
          $region38: #{dyrelu_get_relu_coefs.1} parent=35 // pred_check_branch
            %207 = sbr.rel (0) target = $region40
          $region39: #{dyrelu_get_relu_coefs.1} parent=35 // pred_region
            // Predicated region
            $region41: #{dyrelu_get_relu_coefs.1} parent=39 // pred_check
              _
            $region42: #{dyrelu_get_relu_coefs.1} parent=39 // pred_check_branch
              %209 = sbr.rel (0) target = $region44
            $region43: #{dyrelu_get_relu_coefs.1} parent=39 // pred_region
              // Predicated region
              $region56: #{dyrelu_get_relu_coefs.1} parent=43 // pred_check
                _
              $region57: #{dyrelu_get_relu_coefs.1} parent=43 // pred_check_branch
                %227 = sbr.rel (0) target = $region59
              $region58: #{dyrelu_get_relu_coefs.1} parent=43 // pred_region
                loop: start=0, step=1, limit=1
                $region60: #{dyrelu_get_relu_coefs.1} parent=58 // loop_pre_header
                  _
                $region61: #{dyrelu_get_relu_coefs.1} parent=58 // loop_header
                  %s229 = sphi 0, %s233
                  %p230 = scmp.ge.s32.totalorder %s229, 1
                  %s234 = sphi %s205, %s205
                  %s235 = sphi %s201, %s201
                $region62: #{dyrelu_get_relu_coefs.1} parent=58 // loop_header_branch
                  %232 = sbr.rel (%p230) target = $region66
                $region63: #{dyrelu_get_relu_coefs.1} parent=58 // loop_body
                  %v236 = vld [vmem:[%s234] sm:$0xff]
                  %237 = vst [vmem:[%s235] sm:$0xff] %v236
                  %v238 = vld [vmem:[%s234 + $0x10] sm:$0xff]
                  %239 = vst [vmem:[%s235 + $0x8] sm:$0xff] %v238
                $region64: #{dyrelu_get_relu_coefs.1} parent=58 // loop_footer
                  %s233 = sadd.s32 1, %s229
                $region65: #{dyrelu_get_relu_coefs.1} parent=58 // loop_footer_branch
                  %228 = sbr.rel target = $region61
                $region66: #{dyrelu_get_relu_coefs.1} parent=58 // loop_exit
                  _
              $region59: #{dyrelu_get_relu_coefs.1} parent=43 // pred_fallthru
                _
              // Predicated region
              $region67: #{dyrelu_get_relu_coefs.1} parent=43 // pred_check
                _
              $region68: #{dyrelu_get_relu_coefs.1} parent=43 // pred_check_branch
                %241 = sbr.rel target = $region70
              $region69: #{dyrelu_get_relu_coefs.1} parent=43 // pred_region
                _
              $region70: #{dyrelu_get_relu_coefs.1} parent=43 // pred_fallthru
                _
            $region44: #{dyrelu_get_relu_coefs.1} parent=39 // pred_fallthru
              _
            // Predicated region
            $region45: #{dyrelu_get_relu_coefs.1} parent=39 // pred_check
              _
            $region46: #{dyrelu_get_relu_coefs.1} parent=39 // pred_check_branch
              %211 = sbr.rel target = $region48
            $region47: #{dyrelu_get_relu_coefs.1} parent=39 // pred_region
              %s213 = ssub.s32 256, 1
              loop: start=0, step=1, limit=1
              $region49: #{dyrelu_get_relu_coefs.1} parent=47 // loop_pre_header
                _
              $region50: #{dyrelu_get_relu_coefs.1} parent=47 // loop_header
                %s215 = sphi 0, %s219
                %p216 = scmp.ge.s32.totalorder %s215, 1
                %s220 = sphi %s205, %s205
                %s221 = sphi %s201, %s201
              $region51: #{dyrelu_get_relu_coefs.1} parent=47 // loop_header_branch
                %218 = sbr.rel (%p216) target = $region55
              $region52: #{dyrelu_get_relu_coefs.1} parent=47 // loop_body
                %v222 = vld [vmem:[%s220] sm:%s213]
                %223 = vst [vmem:[%s221] sm:%s213] %v222
                %v224 = vld [vmem:[%s220 + $0x10] sm:%s213]
                %225 = vst [vmem:[%s221 + $0x8] sm:%s213] %v224
              $region53: #{dyrelu_get_relu_coefs.1} parent=47 // loop_footer
                %s219 = sadd.s32 1, %s215
              $region54: #{dyrelu_get_relu_coefs.1} parent=47 // loop_footer_branch
                %214 = sbr.rel target = $region50
              $region55: #{dyrelu_get_relu_coefs.1} parent=47 // loop_exit
                _
            $region48: #{dyrelu_get_relu_coefs.1} parent=39 // pred_fallthru
              _
          $region40: #{dyrelu_get_relu_coefs.1} parent=35 // pred_fallthru
            _
          %242 = vnop
        $region36: #{dyrelu_get_relu_coefs.1} parent=31 // pred_fallthru
          _
      $region32: #{dyrelu_get_relu_coefs.1} parent=5 // pred_fallthru
        _
      %p243 = scmp.le.s32.totalorder 1, %s14
      %p244 = scmp.lt.s32.totalorder %s14, 5
      %p245 = pnand %p243, %p244
      %p246 = pneg %p245
      // Predicated region
      $region71: #{dyrelu_get_relu_coefs.1} parent=5 // pred_check
        _
      $region72: #{dyrelu_get_relu_coefs.1} parent=5 // pred_check_branch
        %248 = sbr.rel (%p245) target = $region74
      $region73: #{dyrelu_get_relu_coefs.1} parent=5 // pred_region
        %s249 = ssub.s32 %s14, 1
        %s250 = sand.u32 %s41, 1
        %s251 = sand.u32 %s41, 1
        %s252 = smul.addr %s251, 16
        %s253 = scalar_lea.vmem [#allocation3], %s252
        // Predicated region
        $region75: #{dyrelu_get_relu_coefs.1} parent=73 // pred_check
          %p254 = pneg %p54
        $region76: #{dyrelu_get_relu_coefs.1} parent=73 // pred_check_branch
          %256 = sbr.rel (%p254) target = $region78
        $region77: #{dyrelu_get_relu_coefs.1} parent=73 // pred_region
          _
        $region78: #{dyrelu_get_relu_coefs.1} parent=73 // pred_fallthru
          _
        %s257 = sand.u32 %s41, 1
        %s258 = sand.u32 %s41, 1
        %s259 = smul.addr %s258, 16
        %s260 = scalar_lea.vmem [#allocation3], %s259
        %p261 = pneg %p54
        %p262 = pneg %p51
        %p263 = pneg %p75
        %p264 = pneg %p72
        %p265 = pneg %p96
        %p266 = pneg %p93
        %p267 = pneg %p117
        %p268 = pneg %p114
        %p269 = pneg %p138
        %p270 = pneg %p135
        %p271 = pneg %p164
        %p272 = pneg %p161
        %s273 = sand.u32 %s151, 1
        %s274 = scalar_lea.sflag [#allocation5], %s273
        %s275 = sand.u32 %s151, 1
        %s276 = scalar_lea.vmem [#allocation4], %s275
        %p277 = scmp.eq.s32.totalorder %s24, 0
        // Predicated region
        $region79: #{dyrelu_get_relu_coefs.1} parent=73 // pred_check
          %p278 = pneg %p277
        $region80: #{dyrelu_get_relu_coefs.1} parent=73 // pred_check_branch
          %280 = sbr.rel (%p278) target = $region82
        $region81: #{dyrelu_get_relu_coefs.1} parent=73 // pred_region
          %281 = vst [vmem:[#allocation2] sm:$0xff] 0.0
          %282 = vst [vmem:[#allocation2 + $0x8] sm:$0xff] 0.0
        $region82: #{dyrelu_get_relu_coefs.1} parent=73 // pred_fallthru
          _
        %v283 = vld [vmem:[#allocation2] sm:$0xff]
        %v284 = vld [vmem:[#allocation2 + $0x8] sm:$0xff]
        %v285 = vld [vmem:[%s253] sm:$0xff]
        %v286 = vld [vmem:[%s253 + $0x8] sm:$0xff]
        %v287 = vadd.f32 %v283, %v285
        %v288 = vadd.f32 %v284, %v286
        %289 = vst [vmem:[#allocation2] sm:$0xff] %v287
        %290 = vst [vmem:[#allocation2 + $0x8] sm:$0xff] %v288
        %p291 = scmp.eq.s32.totalorder %s24, 1
        // Predicated region
        $region83: #{dyrelu_get_relu_coefs.1} parent=73 // pred_check
          %p292 = pneg %p291
        $region84: #{dyrelu_get_relu_coefs.1} parent=73 // pred_check_branch
          %294 = sbr.rel (%p292) target = $region86
        $region85: #{dyrelu_get_relu_coefs.1} parent=73 // pred_region
          %v295 = vld [vmem:[#allocation2] sm:$0xff]
          %v296 = vld [vmem:[#allocation2 + $0x8] sm:$0xff]
          %297 = vxpose.xlu0.b32.start [1/16] %v295, 128
          %298 = vxpose.xlu0.b32.cont [2/16] %v296, 128
          %299 = vxpose.xlu0.b32.cont [3/16] 0.0, 128
          %300 = vxpose.xlu0.b32.cont [4/16] 0.0, 128
          %301 = vxpose.xlu0.b32.cont [5/16] 0.0, 128
          %302 = vxpose.xlu0.b32.cont [6/16] 0.0, 128
          %303 = vxpose.xlu0.b32.cont [7/16] 0.0, 128
          %304 = vxpose.xlu0.b32.cont [8/16] 0.0, 128
          %305 = vxpose.xlu0.b32.cont [9/16] 0.0, 128
          %306 = vxpose.xlu0.b32.cont [10/16] 0.0, 128
          %307 = vxpose.xlu0.b32.cont [11/16] 0.0, 128
          %308 = vxpose.xlu0.b32.cont [12/16] 0.0, 128
          %309 = vxpose.xlu0.b32.cont [13/16] 0.0, 128
          %310 = vxpose.xlu0.b32.cont [14/16] 0.0, 128
          %311 = vxpose.xlu0.b32.cont [15/16] 0.0, 128
          %312 = vxpose.xlu0.b32.end [16/16] 0.0, 128
          %v313 = vpop.trf.xlu0
          %v314 = vpop.trf.xlu0
          %v315 = vpop.trf.xlu0
          %v316 = vpop.trf.xlu0
          %v317 = vpop.trf.xlu0
          %v318 = vpop.trf.xlu0
          %v319 = vpop.trf.xlu0
          %v320 = vpop.trf.xlu0
          %v321 = vpop.trf.xlu0
          %v322 = vpop.trf.xlu0
          %v323 = vpop.trf.xlu0
          %v324 = vpop.trf.xlu0
          %v325 = vpop.trf.xlu0
          %v326 = vpop.trf.xlu0
          %v327 = vpop.trf.xlu0
          %v328 = vpop.trf.xlu0
          %v329 = vld [vmem:[%s1] sm:$0xff]
          %v330 = vld [vmem:[%s1 + $0x8] sm:$0xff]
          %vm331 = vcmask 130048
          %v333 = vsel %vm331, %v313, 0
          %v336 = vsel %vm331, %v314, 0
          %v339 = vsel %vm331, %v315, 0
          %v342 = vsel %vm331, %v316, 0
          %v345 = vsel %vm331, %v317, 0
          %v348 = vsel %vm331, %v318, 0
          %v351 = vsel %vm331, %v319, 0
          %v354 = vsel %vm331, %v320, 0
          %v357 = vsel %vm331, %v321, 0
          %v360 = vsel %vm331, %v322, 0
          %v363 = vsel %vm331, %v323, 0
          %v366 = vsel %vm331, %v324, 0
          %v369 = vsel %vm331, %v325, 0
          %v372 = vsel %vm331, %v326, 0
          %v375 = vsel %vm331, %v327, 0
          %v378 = vsel %vm331, %v328, 0
          %380 = vmatpush.msra.mxu0 0.0
          %381 = vmatpush.msra.mxu0 0.0
          %382 = vmatpush.msra.mxu0 0.0
          %383 = vmatpush.msra.mxu0 0.0
          %384 = vmatpush.msra.mxu0 0.0
          %385 = vmatpush.msra.mxu0 0.0
          %386 = vmatpush.msra.mxu0 0.0
          %387 = vmatpush.msra.mxu0 0.0
          %388 = vmatpush.msra.mxu0 0.0
          %389 = vmatpush.msra.mxu0 0.0
          %390 = vmatpush.msra.mxu0 0.0
          %391 = vmatpush.msra.mxu0 0.0
          %392 = vmatpush.msra.mxu0 0.0
          %393 = vmatpush.msra.mxu0 0.0
          %394 = vmatpush.msra.mxu0 %v330
          %395 = vmatpush.msra.mxu0 %v329
          %396 = vmatmul.f32.gmra.mxu0 %v333
          %v397 = vpop.f32.mrf.mxu0
          %v398 = vadd.f32 0.0, %v397
          %399 = vmatmul.f32.gmra.mxu0 %v336
          %v400 = vpop.f32.mrf.mxu0
          %v401 = vadd.f32 0.0, %v400
          %402 = vmatmul.f32.gmra.mxu0 %v339
          %v403 = vpop.f32.mrf.mxu0
          %v404 = vadd.f32 0.0, %v403
          %405 = vmatmul.f32.gmra.mxu0 %v342
          %v406 = vpop.f32.mrf.mxu0
          %v407 = vadd.f32 0.0, %v406
          %408 = vmatmul.f32.gmra.mxu0 %v345
          %v409 = vpop.f32.mrf.mxu0
          %v410 = vadd.f32 0.0, %v409
          %411 = vmatmul.f32.gmra.mxu0 %v348
          %v412 = vpop.f32.mrf.mxu0
          %v413 = vadd.f32 0.0, %v412
          %414 = vmatmul.f32.gmra.mxu0 %v351
          %v415 = vpop.f32.mrf.mxu0
          %v416 = vadd.f32 0.0, %v415
          %417 = vmatmul.f32.gmra.mxu0 %v354
          %v418 = vpop.f32.mrf.mxu0
          %v419 = vadd.f32 0.0, %v418
          %420 = vmatmul.f32.gmra.mxu0 %v357
          %v421 = vpop.f32.mrf.mxu0
          %v422 = vadd.f32 0.0, %v421
          %423 = vmatmul.f32.gmra.mxu0 %v360
          %v424 = vpop.f32.mrf.mxu0
          %v425 = vadd.f32 0.0, %v424
          %426 = vmatmul.f32.gmra.mxu0 %v363
          %v427 = vpop.f32.mrf.mxu0
          %v428 = vadd.f32 0.0, %v427
          %429 = vmatmul.f32.gmra.mxu0 %v366
          %v430 = vpop.f32.mrf.mxu0
          %v431 = vadd.f32 0.0, %v430
          %432 = vmatmul.f32.gmra.mxu0 %v369
          %v433 = vpop.f32.mrf.mxu0
          %v434 = vadd.f32 0.0, %v433
          %435 = vmatmul.f32.gmra.mxu0 %v372
          %v436 = vpop.f32.mrf.mxu0
          %v437 = vadd.f32 0.0, %v436
          %438 = vmatmul.f32.gmra.mxu0 %v375
          %v439 = vpop.f32.mrf.mxu0
          %v440 = vadd.f32 0.0, %v439
          %441 = vmatmul.f32.gmra.mxu0 %v378
          %v442 = vpop.f32.mrf.mxu0
          %v443 = vadd.f32 0.0, %v442
          %444 = vdwg.mxu0
          %vm445 = vcmask 31744
          %v446 = vsel %vm445, %v398, 0.0
          %v447 = vsel %vm445, %v401, 0.0
          %v448 = vadd.f32 %v446, %v447
          %v449 = vsel %vm445, %v404, 0.0
          %v450 = vadd.f32 %v448, %v449
          %v451 = vsel %vm445, %v407, 0.0
          %v452 = vadd.f32 %v450, %v451
          %v453 = vsel %vm445, %v410, 0.0
          %v454 = vadd.f32 %v452, %v453
          %v455 = vsel %vm445, %v413, 0.0
          %v456 = vadd.f32 %v454, %v455
          %v457 = vsel %vm445, %v416, 0.0
          %v458 = vadd.f32 %v456, %v457
          %v459 = vsel %vm445, %v419, 0.0
          %v460 = vadd.f32 %v458, %v459
          %v461 = vsel %vm445, %v422, 0.0
          %v462 = vadd.f32 %v460, %v461
          %v463 = vsel %vm445, %v425, 0.0
          %v464 = vadd.f32 %v462, %v463
          %v465 = vsel %vm445, %v428, 0.0
          %v466 = vadd.f32 %v464, %v465
          %v467 = vsel %vm445, %v431, 0.0
          %v468 = vadd.f32 %v466, %v467
          %v469 = vsel %vm445, %v434, 0.0
          %v470 = vadd.f32 %v468, %v469
          %v471 = vsel %vm445, %v437, 0.0
          %v472 = vadd.f32 %v470, %v471
          %v473 = vsel %vm445, %v440, 0.0
          %v474 = vadd.f32 %v472, %v473
          %v475 = vsel %vm445, %v443, 0.0
          %v476 = vadd.f32 %v474, %v475
          %v477 = vrot.slane %v476, 4
          %v478 = vadd.f32 %v476, %v477
          %v479 = vrot.slane %v478, 2
          %v480 = vadd.f32 %v478, %v479
          %v481 = vrot.slane %v480, 1
          %v482 = vadd.f32 %v480, %v481
          %v483 = vmul.f32 %v482, 0.00390625
          %v484 = vld [vmem:[%s2] sm:$0x1]
          %v485 = vadd.f32 %v483, %v484
          %v486 = vmax.f32 %v485, 0.0
          %v487 = vld [vmem:[%s3] sm:$0xf]
          %v488 = vld [vmem:[%s4] sm:$0x1]
          %v490 = vsel %vm445, %v486, 0
          %vm492 = vcmask 1043456
          %v494 = vsel %vm492, %v487, 0
          %496 = vmatpush.msra.mxu0 0.0
          %497 = vmatpush.msra.mxu0 0.0
          %498 = vmatpush.msra.mxu0 0.0
          %499 = vmatpush.msra.mxu0 0.0
          %500 = vmatpush.msra.mxu0 0.0
          %501 = vmatpush.msra.mxu0 0.0
          %502 = vmatpush.msra.mxu0 0.0
          %503 = vmatpush.msra.mxu0 0.0
          %504 = vmatpush.msra.mxu0 0.0
          %505 = vmatpush.msra.mxu0 0.0
          %506 = vmatpush.msra.mxu0 0.0
          %507 = vmatpush.msra.mxu0 0.0
          %508 = vmatpush.msra.mxu0 0.0
          %509 = vmatpush.msra.mxu0 0.0
          %510 = vmatpush.msra.mxu0 0.0
          %511 = vmatpush.msra.mxu0 %v494
          %512 = vmatmul.f32.gmra.mxu0 %v490
          %v513 = vpop.f32.mrf.mxu0
          %v514 = vadd.f32 %v488, %v513
          %515 = vdwg.mxu0
          %v516 = vxor.u32 %v514, 2147483648
          %v517 = vmul.f32 %v516, 1.442695
          %v518 = vpow.pop %v517
          %v519 = vadd.f32 %v518, 1.0
          %v520 = vrcp.pop %v519
          %v521 = vmul.f32 %v519, %v520
          %v522 = vsub.f32 1.0, %v521
          %v523 = vmul.f32 %v520, %v522
          %v524 = vadd.f32 %v520, %v523
          %vm525 = vweird.f32 %v519
          %vm526 = vweird.f32 %v520
          %vm527 = vmor %vm525, %vm526
          %v528 = vsel %vm527, %v520, %v524
          %v529 = vand.u32 2147483647, %v519
          %vm530 = vcmp.eq.f32.partialorder %v529, 8.507059e+37
          %v531 = vand.u32 %v519, 2147483648
          %v532 = vor.u32 1.1754944e-38, %v531
          %v533 = vsel %vm530, %v532, %v528
          %v534 = vmul.f32 1.0, %v533
          %v535 = vmul.f32 %v534, 2.0
          %v536 = vsub.f32 %v535, 1.0
          %vm537 = vcmask 24576
          %538 = vst.msk [vmem:[%s276] sm:$0x1] %vm537, %v536
        $region86: #{dyrelu_get_relu_coefs.1} parent=73 // pred_fallthru
          _
        %s539 = sand.u32 %s151, 1
        %s540 = scalar_lea.sflag [#allocation5], %s539
        %s541 = sand.u32 %s151, 1
        %s542 = scalar_lea.vmem [#allocation4], %s541
        // Predicated region
        $region87: #{dyrelu_get_relu_coefs.1} parent=73 // pred_check
          %p543 = pneg %p161
        $region88: #{dyrelu_get_relu_coefs.1} parent=73 // pred_check_branch
          %545 = sbr.rel (%p543) target = $region90
        $region89: #{dyrelu_get_relu_coefs.1} parent=73 // pred_region
          %547 = vsyncadd %s540, 0
          %s548 = scalar_lea.hbm %s5, %s23
          %s550 = sshll.u32 %s542, 4
          %s551 = int_to_ptr.vmem [resolvable:$true] %s550
          %s552 = sshll.u32 %s548, 4
          %s553 = int_to_ptr.hbm [resolvable:$true] %s552
          %555 = dma.vmem_to_hbm [thread:$0]  %s551, 16, %s553, %s540
        $region90: #{dyrelu_get_relu_coefs.1} parent=73 // pred_fallthru
          _
      $region74: #{dyrelu_get_relu_coefs.1} parent=5 // pred_fallthru
        _
      %p556 = scmp.le.s32.totalorder 2, %s14
      // Predicated region
      $region91: #{dyrelu_get_relu_coefs.1} parent=5 // pred_check
        %p557 = pneg %p556
      $region92: #{dyrelu_get_relu_coefs.1} parent=5 // pred_check_branch
        %559 = sbr.rel (%p557) target = $region94
      $region93: #{dyrelu_get_relu_coefs.1} parent=5 // pred_region
        %s560 = ssub.s32 %s14, 2
        // Predicated region
        $region95: #{dyrelu_get_relu_coefs.1} parent=93 // pred_check
          %p561 = pneg %p167
        $region96: #{dyrelu_get_relu_coefs.1} parent=93 // pred_check_branch
          %563 = sbr.rel (%p561) target = $region98
        $region97: #{dyrelu_get_relu_coefs.1} parent=93 // pred_region
          %s564 = sand.u32 %s152, 1
          %s565 = scalar_lea.sflag [#allocation5], %s564
          %s566 = sand.u32 %s152, 1
          %s567 = scalar_lea.vmem [#allocation4], %s566
          %569 = dma.done %s565, 16
        $region98: #{dyrelu_get_relu_coefs.1} parent=93 // pred_fallthru
          _
      $region94: #{dyrelu_get_relu_coefs.1} parent=5 // pred_fallthru
        _
    $region6: #{dyrelu_get_relu_coefs.1} parent=1 // loop_footer
      %s18 = sadd.s32 1, %s14
    $region7: #{dyrelu_get_relu_coefs.1} parent=1 // loop_footer_branch
      %13 = sbr.rel target = $region3
    $region8: #{dyrelu_get_relu_coefs.1} parent=1 // loop_exit
      _
    %570 = vsyncpa [#allocation5], 1
    %s571 = scalar_lea.sflag [#allocation5], 1
    %572 = vsyncpa %s571, 1

</llo_original>
